<compile_context>
chip_gen: v6e
topology: v6e:2x2x1
jax: 0.10.0
libtpu: 0.0.40
codegen_flags: <defaults>
</compile_context>

<pallas_src>
import functools

import jax
import jax.numpy as jnp
from jax import lax
from jax.experimental import pallas as pl
from jax.experimental.pallas import tpu as pltpu


def _round_up(x, m):
    return (x + m - 1) // m * m


def _plan(C, N, wire_itemsize, max_block_bytes=None):
    """Pick tile_n / grid split / VMEM limit, generation-aware."""
    try:
        info = pltpu.get_tpu_info()
        vmem_cap = int(getattr(info, "vmem_capacity_bytes", 64 << 20))
    except Exception:  # pragma: no cover - defensive fallback
        vmem_cap = 64 << 20

    if max_block_bytes is None:
        # f32 working-set budget per (1, C, tile_n) block: bigger on 128-MiB VMEM
        # parts (v5e/v6e), smaller on v7x (64 MiB per TC).
        max_block_bytes = (4 << 20) if vmem_cap > (96 << 20) else (2 << 20)

    # Largest multiple-of-128 lane count whose f32 block stays under budget.
    lane_cap = max(128, (max_block_bytes // (4 * C)) // 128 * 128)
    n128 = _round_up(N, 128)

    if n128 <= lane_cap:
        # Whole N extent in one block; block last dim == array dim (no OOB lanes).
        tile_n = N
        tiles_total = 1
    else:
        tile_n = lane_cap
        tiles_total = -(-N // tile_n)        # cdiv; ragged last tile handled in-kernel

    # Megacore split of the N tiles (v7x has 2 TCs); only when it divides evenly so no
    # fully out-of-bounds blocks are ever generated.
    nsplit = 2 if (tiles_total % 2 == 0) else 1
    tiles_per_split = tiles_total // nsplit
    needs_lane_mask = (tiles_total * tile_n != N)

    # VMEM limit: ~10 live full-size f32 temporaries + 2 inputs x 2 buffers (wire dtype)
    # + headroom, capped below the physical capacity.
    block_f32 = 4 * C * tile_n
    need = 10 * block_f32 + 2 * 2 * C * tile_n * wire_itemsize + (4 << 20)
    vmem_limit = int(min(max(need, 32 << 20), vmem_cap - (8 << 20)))
    return tile_n, tiles_per_split, nsplit, needs_lane_mask, vmem_limit


def _selftrain_loss_kernel(*refs, n_valid, tile_n, has_mask, needs_lane_mask):
    if has_mask:
        x_ref, t_ref, m_ref, o_ref = refs
    else:
        x_ref, t_ref, o_ref = refs

    n_idx = pl.program_id(2)

    @pl.when(n_idx == 0)
    def _init():
        o_ref[...] = jnp.zeros_like(o_ref)

    x = x_ref[...].astype(jnp.float32)      # (1, C, TN) input logits
    t = t_ref[...].astype(jnp.float32)      # (1, C, TN) target logits

    # log_softmax(input, axis=1): one full-size exp; log only on the (1,1,TN) sum.
    x_sh = x - jnp.max(x, axis=1, keepdims=True)
    log_p = x_sh - jnp.log(jnp.sum(jnp.exp(x_sh), axis=1, keepdims=True))

    # softmax + log_softmax(target, axis=1) sharing one exp; EUP reciprocal + Newton.
    t_sh = t - jnp.max(t, axis=1, keepdims=True)
    t_exp = jnp.exp(t_sh)
    s = jnp.sum(t_exp, axis=1, keepdims=True)            # (1, 1, TN), >= 1
    inv_s = pl.reciprocal(s, approx=True)
    inv_s = inv_s * (2.0 - s * inv_s)                     # one Newton step -> ~f32 exact
    q = t_exp * inv_s
    log_q = t_sh - jnp.log(s)

    if has_mask:
        m = m_ref[...].astype(jnp.float32)                # (1, C, 1)
        log_m = jnp.log(jnp.where(m > 0.0, m, 1.0))       # tiny per-(b,C) EUP log
        # Materialize the lane broadcasts once (JAX does not CSE broadcast_in_dim).
        m_b = jnp.broadcast_to(m, (1, q.shape[1], tile_n))
        log_m_b = jnp.broadcast_to(log_m, (1, q.shape[1], tile_n))
        qm = q * m_b
        # Masked KL pointwise (mask >= 0):
        #   xlogy(q·m, q·m) - (q·m)·(m·log_p) == q·m·(log_q + log_m - m·log_p) for m > 0
        kl = jnp.where(m_b > 0.0, qm * ((log_q + log_m_b) - m_b * log_p), 0.0)
    else:
        # softmax q > 0 always  =>  xlogy(q, q) == q·log_q
        kl = q * (log_q - log_p)

    # Reduce class axis now; partials stay lane-resident and accumulate into the
    # VMEM-resident output block (VPU adds only; no per-step cross-lane reduce).
    kl_n = jnp.sum(kl, axis=1, keepdims=True)             # (1, 1, TN)

    if needs_lane_mask:
        # Ragged last tile only costs a (1,1,TN)-sized iota/compare/select here.
        base = (pl.program_id(1) * pl.num_programs(2) + n_idx) * tile_n
        col = base + lax.broadcasted_iota(jnp.int32, (1, 1, tile_n), 2)
        kl_n = jnp.where(col < n_valid, kl_n, 0.0)

    o_ref[...] += kl_n


@functools.partial(jax.jit, static_argnames=("max_block_bytes",))
def self_train_loss(inp, target, mask=None, *, max_block_bytes=None):
    """Pallas equivalent of SelfTrainLoss.forward(input, target, mask).

    inp, target: (B, C, N) logits (f32 or bf16 on the HBM wire; f32 math in-kernel).
    mask: optional (B, C), broadcast over N (PyTorch's mask.unsqueeze(-1)); assumed >= 0.
    """
    B, C, N = inp.shape
    has_mask = mask is not None
    wire_itemsize = max(jnp.dtype(inp.dtype).itemsize, jnp.dtype(target.dtype).itemsize)
    tile_n, tiles_per_split, nsplit, needs_lane_mask, vmem_limit = _plan(
        C, N, wire_itemsize, max_block_bytes)

    kernel = functools.partial(
        _selftrain_loss_kernel, n_valid=N, tile_n=tile_n,
        has_mask=has_mask, needs_lane_mask=needs_lane_mask)

    in_specs = [
        pl.BlockSpec((1, C, tile_n), lambda b, s, n: (b, 0, s * tiles_per_split + n)),
        pl.BlockSpec((1, C, tile_n), lambda b, s, n: (b, 0, s * tiles_per_split + n)),
    ]
    args = [inp, target]
    if has_mask:
        # Mask block index is constant over (s, n) -> DMA'd once per batch row.
        in_specs.append(pl.BlockSpec((1, C, 1), lambda b, s, n: (b, 0, 0)))
        args.append(mask.astype(jnp.float32)[..., None])

    partials = pl.pallas_call(
        kernel,
        out_shape=jax.ShapeDtypeStruct((B, nsplit, tile_n), jnp.float32),
        grid_spec=pltpu.PrefetchScalarGridSpec(
            num_scalar_prefetch=0,
            grid=(B, nsplit, tiles_per_split),
            in_specs=in_specs,
            # Output block is the lane-dense per-(b, split) accumulator: same block
            # index across the (arbitrary) n axis -> stays resident in VMEM.
            out_specs=pl.BlockSpec((1, 1, tile_n), lambda b, s, n: (b, s, 0)),
        ),
        compiler_params=pltpu.CompilerParams(
            dimension_semantics=("parallel", "parallel", "arbitrary"),
            vmem_limit_bytes=vmem_limit,
        ),
    )(*args)

    # KLDivLoss(reduction='batchmean'): sum over all elements / batch size.
    # (single tiny cross-lane reduce, done once here rather than per grid step)
    return jnp.sum(partials) / B


def _reference(inp, target, mask=None):
    # pure-JAX reference matching PyTorch KLDivLoss('batchmean', log_target=False)
    B = inp.shape[0]
    log_p = jax.nn.log_softmax(inp.astype(jnp.float32), axis=1)
    q = jax.nn.softmax(target.astype(jnp.float32), axis=1)
    if mask is not None:
        m = mask.astype(jnp.float32)[..., None]
        log_p = log_p * m
        q = q * m
    kl = jnp.where(q > 0.0, q * jnp.log(jnp.where(q > 0.0, q, 1.0)), 0.0) - q * log_p
    return jnp.sum(kl) / B


if __name__ == "__main__":
    key = jax.random.PRNGKey(0)
    k1, k2, k3, k4 = jax.random.split(key, 4)

    # Config 1: small shapes, N deliberately NOT a multiple of 128 (single-block path).
    B, C, N = 2, 16, 200
    x = jax.random.normal(k1, (B, C, N), dtype=jnp.float32)
    t = jax.random.normal(k2, (B, C, N), dtype=jnp.float32)
    binary_mask = (jax.random.uniform(k3, (B, C)) > 0.3).astype(jnp.float32)
    frac_mask = jax.random.uniform(k4, (B, C))

    for name, m in (("binary_mask", binary_mask),
                    ("fractional_mask", frac_mask),
                    ("no_mask", None)):
        got = jax.block_until_ready(self_train_loss(x, t, m))
        want = _reference(x, t, m)
        assert jnp.allclose(got, want, rtol=1e-4, atol=1e-4), (name, got, want)

    # Config 2: different B/C, lane-aligned N, bf16 inputs kept bf16 on the wire.
    B2, C2, N2 = 3, 8, 384
    x2 = jax.random.normal(k1, (B2, C2, N2), dtype=jnp.bfloat16)
    t2 = jax.random.normal(k2, (B2, C2, N2), dtype=jnp.bfloat16)
    got2 = jax.block_until_ready(self_train_loss(x2, t2, None))
    want2 = _reference(x2, t2, None)
    assert jnp.allclose(got2, want2, rtol=1e-3, atol=1e-3), (got2, want2)

    # Config 3: small block budget forces the multi-tile streamed path
    # (ragged last tile + parallel N split), which is what large real inputs hit.
    B3, C3, N3 = 2, 8, 1000
    x3 = jax.random.normal(k3, (B3, C3, N3), dtype=jnp.float32)
    t3 = jax.random.normal(k4, (B3, C3, N3), dtype=jnp.float32)
    m3 = (jax.random.uniform(k1, (B3, C3)) > 0.5).astype(jnp.float32)
    got3 = jax.block_until_ready(self_train_loss(x3, t3, m3, max_block_bytes=4096))
    want3 = _reference(x3, t3, m3)
    assert jnp.allclose(got3, want3, rtol=1e-4, atol=1e-4), (got3, want3)

    print("KERNEL_OK")
</pallas_src>

<mosaic_0001>
module attributes {stable_mosaic.version = 11 : i64} {
  func.func @_selftrain_loss_kernel(%arg0: i32, %arg1: i32, %arg2: i32, %arg3: memref<1x16x200xf32, #tpu.memory_space<vmem>>, %arg4: memref<1x16x200xf32, #tpu.memory_space<vmem>>, %arg5: memref<1x16x1xf32, #tpu.memory_space<vmem>>, %arg6: memref<1x1x200xf32, #tpu.memory_space<vmem>>) attributes {dimension_semantics = [#tpu.dimension_semantics<parallel>, #tpu.dimension_semantics<parallel>, #tpu.dimension_semantics<arbitrary>], iteration_bounds = array<i64: 2, 1, 1>, scalar_prefetch = 0 : i64, scratch_operands = 0 : i64, tpu.core_type = #tpu.core_type<tc>, window_params = [{transform_indices = @transform_0, window_bounds = array<i64: 1, 16, 200>}, {transform_indices = @transform_1, window_bounds = array<i64: 1, 16, 200>}, {transform_indices = @transform_2, window_bounds = array<i64: 1, 16, 1>}, {transform_indices = @transform_3, window_bounds = array<i64: 1, 1, 200>}]} {
    %c0_i32 = arith.constant 0 : i32
    %0 = arith.cmpi eq, %arg2, %c0_i32 : i32
    %1 = arith.extui %0 : i1 to i32
    %c0_i32_0 = arith.constant 0 : i32
    %2 = arith.cmpi ne, %1, %c0_i32_0 : i32
    scf.if %2 {
      %cst_24 = arith.constant 0.000000e+00 : f32
      %56 = vector.broadcast %cst_24 : f32 to vector<1x1x200xf32>
      %c0_25 = arith.constant 0 : index
      %c0_26 = arith.constant 0 : index
      %c0_27 = arith.constant 0 : index
      %57 = vector.load %arg6[%c0_25, %c0_26, %c0_27] : memref<1x1x200xf32, #tpu.memory_space<vmem>>, vector<1x1x200xf32>
      tpu.vector_store %arg6[%c0_25, %c0_26, %c0_27], %56 {strides = array<i32>} : memref<1x1x200xf32, #tpu.memory_space<vmem>>, vector<1x1x200xf32>,
    } else {
    }
    %c0 = arith.constant 0 : index
    %c0_1 = arith.constant 0 : index
    %c0_2 = arith.constant 0 : index
    %3 = vector.load %arg3[%c0, %c0_1, %c0_2] : memref<1x16x200xf32, #tpu.memory_space<vmem>>, vector<1x16x200xf32>
    %c0_3 = arith.constant 0 : index
    %c0_4 = arith.constant 0 : index
    %c0_5 = arith.constant 0 : index
    %4 = vector.load %arg4[%c0_3, %c0_4, %c0_5] : memref<1x16x200xf32, #tpu.memory_space<vmem>>, vector<1x16x200xf32>
    %cst = arith.constant dense<0xFF800000> : vector<1x200xf32>
    %5 = vector.multi_reduction <maximumf>, %3, %cst [1] : vector<1x16x200xf32> to vector<1x200xf32>
    %6 = vector.shape_cast %5 : vector<1x200xf32> to vector<1x1x200xf32>
    %7 = vector.broadcast %6 : vector<1x1x200xf32> to vector<1x16x200xf32>
    %8 = arith.subf %3, %7 : vector<1x16x200xf32>
    %9 = math.exp %8 : vector<1x16x200xf32>
    %cst_6 = arith.constant dense<0.000000e+00> : vector<1x200xf32>
    %10 = vector.multi_reduction <add>, %9, %cst_6 [1] : vector<1x16x200xf32> to vector<1x200xf32>
    %11 = vector.shape_cast %10 : vector<1x200xf32> to vector<1x1x200xf32>
    %12 = math.log %11 : vector<1x1x200xf32>
    %13 = vector.broadcast %12 : vector<1x1x200xf32> to vector<1x16x200xf32>
    %14 = arith.subf %8, %13 : vector<1x16x200xf32>
    %cst_7 = arith.constant dense<0xFF800000> : vector<1x200xf32>
    %15 = vector.multi_reduction <maximumf>, %4, %cst_7 [1] : vector<1x16x200xf32> to vector<1x200xf32>
    %16 = vector.shape_cast %15 : vector<1x200xf32> to vector<1x1x200xf32>
    %17 = vector.broadcast %16 : vector<1x1x200xf32> to vector<1x16x200xf32>
    %18 = arith.subf %4, %17 : vector<1x16x200xf32>
    %19 = math.exp %18 : vector<1x16x200xf32>
    %cst_8 = arith.constant dense<0.000000e+00> : vector<1x200xf32>
    %20 = vector.multi_reduction <add>, %19, %cst_8 [1] : vector<1x16x200xf32> to vector<1x200xf32>
    %21 = vector.shape_cast %20 : vector<1x200xf32> to vector<1x1x200xf32>
    %22 = tpu.reciprocal %21 {approx = true} : vector<1x1x200xf32> -> vector<1x1x200xf32>
    %23 = arith.mulf %21, %22 : vector<1x1x200xf32>
    %cst_9 = arith.constant 2.000000e+00 : f32
    %24 = vector.broadcast %cst_9 : f32 to vector<1x1x200xf32>
    %25 = arith.subf %24, %23 : vector<1x1x200xf32>
    %26 = arith.mulf %22, %25 : vector<1x1x200xf32>
    %27 = vector.broadcast %26 : vector<1x1x200xf32> to vector<1x16x200xf32>
    %28 = arith.mulf %19, %27 : vector<1x16x200xf32>
    %29 = math.log %21 : vector<1x1x200xf32>
    %30 = vector.broadcast %29 : vector<1x1x200xf32> to vector<1x16x200xf32>
    %31 = arith.subf %18, %30 : vector<1x16x200xf32>
    %c0_10 = arith.constant 0 : index
    %c0_11 = arith.constant 0 : index
    %c0_12 = arith.constant 0 : index
    %32 = vector.load %arg5[%c0_10, %c0_11, %c0_12] : memref<1x16x1xf32, #tpu.memory_space<vmem>>, vector<1x16x1xf32>
    %cst_13 = arith.constant 0.000000e+00 : f32
    %33 = vector.broadcast %cst_13 : f32 to vector<1x16x1xf32>
    %34 = arith.cmpf ogt, %32, %33 : vector<1x16x1xf32>
    %cst_14 = arith.constant 1.000000e+00 : f32
    %35 = vector.broadcast %cst_14 : f32 to vector<1x16x1xf32>
    %36 = arith.select %34, %32, %35 : vector<1x16x1xi1>, vector<1x16x1xf32>
    %37 = math.log %36 : vector<1x16x1xf32>
    %38 = vector.shape_cast %32 : vector<1x16x1xf32> to vector<1x16x1xf32>
    %39 = vector.broadcast %38 : vector<1x16x1xf32> to vector<1x16x200xf32>
    %40 = vector.shape_cast %37 : vector<1x16x1xf32> to vector<1x16x1xf32>
    %41 = vector.broadcast %40 : vector<1x16x1xf32> to vector<1x16x200xf32>
    %42 = arith.mulf %28, %39 : vector<1x16x200xf32>
    %cst_15 = arith.constant 0.000000e+00 : f32
    %43 = vector.broadcast %cst_15 : f32 to vector<1x16x200xf32>
    %44 = arith.cmpf ogt, %39, %43 : vector<1x16x200xf32>
    %45 = arith.addf %31, %41 : vector<1x16x200xf32>
    %46 = arith.mulf %39, %14 : vector<1x16x200xf32>
    %47 = arith.subf %45, %46 : vector<1x16x200xf32>
    %48 = arith.mulf %42, %47 : vector<1x16x200xf32>
    %cst_16 = arith.constant 0.000000e+00 : f32
    %49 = vector.broadcast %cst_16 : f32 to vector<1x16x200xf32>
    %50 = arith.select %44, %48, %49 : vector<1x16x200xi1>, vector<1x16x200xf32>
    %cst_17 = arith.constant dense<0.000000e+00> : vector<1x200xf32>
    %51 = vector.multi_reduction <add>, %50, %cst_17 [1] : vector<1x16x200xf32> to vector<1x200xf32>
    %52 = vector.shape_cast %51 : vector<1x200xf32> to vector<1x1x200xf32>
    %c0_18 = arith.constant 0 : index
    %c0_19 = arith.constant 0 : index
    %c0_20 = arith.constant 0 : index
    %53 = vector.load %arg6[%c0_18, %c0_19, %c0_20] : memref<1x1x200xf32, #tpu.memory_space<vmem>>, vector<1x1x200xf32>
    %54 = arith.addf %53, %52 : vector<1x1x200xf32>
    %c0_21 = arith.constant 0 : index
    %c0_22 = arith.constant 0 : index
    %c0_23 = arith.constant 0 : index
    %55 = vector.load %arg6[%c0_21, %c0_22, %c0_23] : memref<1x1x200xf32, #tpu.memory_space<vmem>>, vector<1x1x200xf32>
    tpu.vector_store %arg6[%c0_21, %c0_22, %c0_23], %54 {strides = array<i32>} : memref<1x1x200xf32, #tpu.memory_space<vmem>>, vector<1x1x200xf32>,
    return
  }
  func.func @transform_0(%arg0: i32, %arg1: i32, %arg2: i32) -> (i32, i32, i32) {
    %c1_i32 = arith.constant 1 : i32
    %0 = arith.muli %arg1, %c1_i32 : i32
    %1 = arith.addi %0, %arg2 : i32
    %c0_i32 = arith.constant 0 : i32
    %c0_i32_0 = arith.constant 0 : i32
    return %arg0, %c0_i32, %1 : i32, i32, i32
  }
  func.func @transform_1(%arg0: i32, %arg1: i32, %arg2: i32) -> (i32, i32, i32) {
    %c1_i32 = arith.constant 1 : i32
    %0 = arith.muli %arg1, %c1_i32 : i32
    %1 = arith.addi %0, %arg2 : i32
    %c0_i32 = arith.constant 0 : i32
    %c0_i32_0 = arith.constant 0 : i32
    return %arg0, %c0_i32, %1 : i32, i32, i32
  }
  func.func @transform_2(%arg0: i32, %arg1: i32, %arg2: i32) -> (i32, i32, i32) {
    %c0_i32 = arith.constant 0 : i32
    %c0_i32_0 = arith.constant 0 : i32
    %c0_i32_1 = arith.constant 0 : i32
    return %arg0, %c0_i32, %c0_i32_0 : i32, i32, i32
  }
  func.func @transform_3(%arg0: i32, %arg1: i32, %arg2: i32) -> (i32, i32, i32) {
    %c0_i32 = arith.constant 0 : i32
    %c0_i32_0 = arith.constant 0 : i32
    return %arg0, %arg1, %c0_i32 : i32, i32, i32
  }
}

</mosaic_0001>

<llo_original>
// kernel: self_train_loss.1
$region0: #{self_train_loss.1}
  #allocation0 [shape = 'u32[]', space=smem, size = 0x4, offset = 0x4, fixed_abs, tag = 'smem constant byte address 0x4 - core index']
  #allocation1 [shape = 'u32[144,128]{1,0:T(1,128)}', space=vmem, size = 0x12000, scoped, tag = 'internal scratch']
  %s0 = inlined_call_operand.hbm [shape: f32[2,16,200], index: 0, kind: input, shape index: {}]
  %s1 = inlined_call_operand.hbm [shape: f32[2,16,200], index: 1, kind: input, shape index: {}]
  %s2 = inlined_call_operand.vmem [shape: f32[2,16,1], index: 2, kind: input, shape index: {}]
  %s3 = inlined_call_operand.vmem [shape: f32[2,1,200], index: 3, kind: output, shape index: {}]
  %s4 = sld [smem:[#allocation0]]
  $region57: #{self_train_loss.1} parent=0
    _
  %s6 = ssub.s32 1, %s4
  %s7 = scalar_select 0, %s6, %s4
  $region1: #{self_train_loss.1} parent=0
    #allocation2 [shape = 'u8[32768]{0}', space=vmem, size = 0x8000, scoped, tag = 'input window, operand 0']
    #allocation3 [shape = 's32[2]{0}', space=sflag, size = 0x8, scoped, tag = 'scoped memory for self_train_loss.1']
    #allocation4 [shape = 'u8[32768]{0}', space=vmem, size = 0x8000, scoped, tag = 'input window, operand 1']
    #allocation5 [shape = 's32[2]{0}', space=sflag, size = 0x8, scoped, tag = 'scoped memory for self_train_loss.1']
    %8 = vsyncpa [#allocation3], 0
    %s9 = scalar_lea.sflag [#allocation3], 1
    %10 = vsyncpa %s9, 0
    %11 = vsyncpa [#allocation5], 0
    %s12 = scalar_lea.sflag [#allocation5], 1
    %13 = vsyncpa %s12, 0
    loop: start=0, step=1, limit=4
    $region2: #{self_train_loss.1} parent=1 // loop_pre_header
      _
    $region3: #{self_train_loss.1} parent=1 // loop_header
      %s15 = sphi 0, %s19
      %p16 = scmp.ge.s32.totalorder %s15, 4
      %s22 = sphi 0, %s41
      %s23 = sphi 0, %s37
      %s24 = sphi 0, %s33
      %s25 = sphi 0, %s22
      %s26 = sphi 0, %s23
      %s27 = sphi 0, %s24
      %s28 = sphi 0, %s25
      %s29 = sphi 0, %s26
      %s30 = sphi 0, %s27
      %s48 = sphi 0, %s50
      %s51 = sphi 0, %s48
      %s52 = sphi 0, %s51
      %s68 = sphi 0, %s52
      %s78 = sphi 0, %s80
      %s81 = sphi 0, %s78
      %s82 = sphi 0, %s81
      %s98 = sphi 0, %s82
      %s104 = sphi 0, %s106
      %s107 = sphi 0, %s104
      %s108 = sphi 0, %s107
      %s124 = sphi 0, %s108
      %s132 = sphi 0, %s134
      %s135 = sphi 0, %s132
      %s136 = sphi 0, %s135
      %s152 = sphi 0, %s136
    $region4: #{self_train_loss.1} parent=1 // loop_header_branch
      %18 = sbr.rel (%p16) target = $region8
    $region5: #{self_train_loss.1} parent=1 // loop_body
      %s20 = ssub.s32 %s15, 1
      %s21 = ssub.s32 %s15, 2
      %s31 = sadd.s32 1, %s24
      %p32 = scmp.ge.s32.totalorder %s31, 1
      %s33 = scalar_select %p32, 0, %s31
      %s34 = sadd.s32 1, %s23
      %s35 = scalar_select %p32, %s34, %s23
      %p36 = scmp.ge.s32.totalorder %s35, 1
      %s37 = scalar_select %p36, 0, %s35
      %s38 = sadd.s32 1, %s22
      %s39 = scalar_select %p36, %s38, %s22
      %p40 = scmp.ge.s32.totalorder %s39, 2
      %s41 = scalar_select %p40, 0, %s39
      %s42 = sadd.s32 %s23, %s24
      %s43 = sadd.s32 %s37, %s33
      %s44 = ssub.s32 %s22, %s41
      %s45 = ssub.s32 %s42, %s43
      %s46 = sor.u32 %s44, %s45
      %p47 = scmp.eq.s32.totalorder %s46, 0
      %s49 = sadd.s32 %s48, 1
      %s50 = scalar_select %p47, %s48, %s49
      %p53 = pneg %p47
      %p54 = scmp.eq.s32.totalorder %s15, 1
      %p55 = por %p53, %p54
      %p56 = scmp.ne.s32.totalorder %s48, %s51
      %p57 = scmp.eq.s32.totalorder %s15, 0
      %p58 = por %p56, %p57
      %p59 = scmp.ne.s32.totalorder %s48, %s51
      %p60 = scmp.eq.s32.totalorder %s20, 1
      %p61 = por %p59, %p60
      %p62 = scmp.ne.s32.totalorder %s51, %s52
      %p63 = scmp.eq.s32.totalorder %s20, 0
      %p64 = por %p62, %p63
      %p65 = scmp.ne.s32.totalorder %s51, %s52
      %p66 = scmp.eq.s32.totalorder %s21, 1
      %p67 = por %p65, %p66
      %p69 = scmp.ne.s32.totalorder %s52, %s68
      %p70 = scmp.eq.s32.totalorder %s21, 0
      %p71 = por %p69, %p70
      %s72 = sadd.s32 %s23, %s24
      %s73 = sadd.s32 %s37, %s33
      %s74 = ssub.s32 %s22, %s41
      %s75 = ssub.s32 %s72, %s73
      %s76 = sor.u32 %s74, %s75
      %p77 = scmp.eq.s32.totalorder %s76, 0
      %s79 = sadd.s32 %s78, 1
      %s80 = scalar_select %p77, %s78, %s79
      %p83 = pneg %p77
      %p84 = scmp.eq.s32.totalorder %s15, 1
      %p85 = por %p83, %p84
      %p86 = scmp.ne.s32.totalorder %s78, %s81
      %p87 = scmp.eq.s32.totalorder %s15, 0
      %p88 = por %p86, %p87
      %p89 = scmp.ne.s32.totalorder %s78, %s81
      %p90 = scmp.eq.s32.totalorder %s20, 1
      %p91 = por %p89, %p90
      %p92 = scmp.ne.s32.totalorder %s81, %s82
      %p93 = scmp.eq.s32.totalorder %s20, 0
      %p94 = por %p92, %p93
      %p95 = scmp.ne.s32.totalorder %s81, %s82
      %p96 = scmp.eq.s32.totalorder %s21, 1
      %p97 = por %p95, %p96
      %p99 = scmp.ne.s32.totalorder %s82, %s98
      %p100 = scmp.eq.s32.totalorder %s21, 0
      %p101 = por %p99, %p100
      %s102 = ssub.s32 %s22, %s41
      %p103 = scmp.eq.s32.totalorder %s102, 0
      %s105 = sadd.s32 %s104, 1
      %s106 = scalar_select %p103, %s104, %s105
      %p109 = pneg %p103
      %p110 = scmp.eq.s32.totalorder %s15, 1
      %p111 = por %p109, %p110
      %p112 = scmp.ne.s32.totalorder %s104, %s107
      %p113 = scmp.eq.s32.totalorder %s15, 0
      %p114 = por %p112, %p113
      %p115 = scmp.ne.s32.totalorder %s104, %s107
      %p116 = scmp.eq.s32.totalorder %s20, 1
      %p117 = por %p115, %p116
      %p118 = scmp.ne.s32.totalorder %s107, %s108
      %p119 = scmp.eq.s32.totalorder %s20, 0
      %p120 = por %p118, %p119
      %p121 = scmp.ne.s32.totalorder %s107, %s108
      %p122 = scmp.eq.s32.totalorder %s21, 1
      %p123 = por %p121, %p122
      %p125 = scmp.ne.s32.totalorder %s108, %s124
      %p126 = scmp.eq.s32.totalorder %s21, 0
      %p127 = por %p125, %p126
      %s128 = ssub.s32 %s22, %s41
      %s129 = ssub.s32 %s23, %s37
      %s130 = sor.u32 %s128, %s129
      %p131 = scmp.eq.s32.totalorder %s130, 0
      %s133 = sadd.s32 %s132, 1
      %s134 = scalar_select %p131, %s132, %s133
      %p137 = pneg %p131
      %p138 = scmp.eq.s32.totalorder %s15, 1
      %p139 = por %p137, %p138
      %p140 = scmp.ne.s32.totalorder %s132, %s135
      %p141 = scmp.eq.s32.totalorder %s15, 0
      %p142 = por %p140, %p141
      %p143 = scmp.ne.s32.totalorder %s132, %s135
      %p144 = scmp.eq.s32.totalorder %s20, 1
      %p145 = por %p143, %p144
      %p146 = scmp.ne.s32.totalorder %s135, %s136
      %p147 = scmp.eq.s32.totalorder %s20, 0
      %p148 = por %p146, %p147
      %p149 = scmp.ne.s32.totalorder %s135, %s136
      %p150 = scmp.eq.s32.totalorder %s21, 1
      %p151 = por %p149, %p150
      %p153 = scmp.ne.s32.totalorder %s136, %s152
      %p154 = scmp.eq.s32.totalorder %s21, 0
      %p155 = por %p153, %p154
      %p156 = scmp.le.s32.totalorder 1, %s15
      %p157 = scmp.lt.s32.totalorder %s15, 3
      %p158 = pnand %p156, %p157
      %p159 = pneg %p158
      // Predicated region
      $region9: #{self_train_loss.1} parent=5 // pred_check
        _
      $region10: #{self_train_loss.1} parent=5 // pred_check_branch
        %161 = sbr.rel (%p158) target = $region12
      $region11: #{self_train_loss.1} parent=5 // pred_region
        %s162 = ssub.s32 %s15, 1
      $region12: #{self_train_loss.1} parent=5 // pred_fallthru
        _
      %p163 = scmp.lt.s32.totalorder %s15, 2
      // Predicated region
      $region13: #{self_train_loss.1} parent=5 // pred_check
        %p164 = pneg %p163
      $region14: #{self_train_loss.1} parent=5 // pred_check_branch
        %166 = sbr.rel (%p164) target = $region16
      $region15: #{self_train_loss.1} parent=5 // pred_region
        // Predicated region
        $region17: #{self_train_loss.1} parent=15 // pred_check
          %p167 = pneg %p58
        $region18: #{self_train_loss.1} parent=15 // pred_check_branch
          %169 = sbr.rel (%p167) target = $region20
        $region19: #{self_train_loss.1} parent=15 // pred_region
          %s170 = sand.u32 %s48, 1
          %s171 = scalar_lea.sflag [#allocation3], %s170
          %s172 = sand.u32 %s48, 1
          %s173 = smul.addr %s172, 32
          %s174 = scalar_lea.vmem [#allocation2], %s173
          %s175 = sadd.s32 %s23, %s24
          %s176 = smul.u32 2, %s175
          %s178 = ssub.s32 512, 512
          %179 = vsyncadd %s171, %s178
          %s180 = smul.addr %s22, 4
          %s181 = sadd.s32 %s176, %s180
          %s182 = smul.addr %s181, 128
          %s183 = scalar_lea.hbm %s0, %s182
          %s184 = sshll.u32 %s174, 4
          %s185 = int_to_ptr.vmem [resolvable:$true] %s184
          %190 = dma.hbm_to_vmem [thread:$0]  %s183, 512, %s185, %s171, 256, 256, 16
        $region20: #{self_train_loss.1} parent=15 // pred_fallthru
          _
        // Predicated region
        $region21: #{self_train_loss.1} parent=15 // pred_check
          %p191 = pneg %p88
        $region22: #{self_train_loss.1} parent=15 // pred_check_branch
          %193 = sbr.rel (%p191) target = $region24
        $region23: #{self_train_loss.1} parent=15 // pred_region
          %s194 = sand.u32 %s78, 1
          %s195 = scalar_lea.sflag [#allocation5], %s194
          %s196 = sand.u32 %s78, 1
          %s197 = smul.addr %s196, 32
          %s198 = scalar_lea.vmem [#allocation4], %s197
          %s199 = sadd.s32 %s23, %s24
          %s200 = smul.u32 2, %s199
          %s202 = ssub.s32 512, 512
          %203 = vsyncadd %s195, %s202
          %s204 = smul.addr %s22, 4
          %s205 = sadd.s32 %s200, %s204
          %s206 = smul.addr %s205, 128
          %s207 = scalar_lea.hbm %s1, %s206
          %s208 = sshll.u32 %s198, 4
          %s209 = int_to_ptr.vmem [resolvable:$true] %s208
          %214 = dma.hbm_to_vmem [thread:$0]  %s207, 512, %s209, %s195, 256, 256, 16
        $region24: #{self_train_loss.1} parent=15 // pred_fallthru
          _
        // Predicated region
        $region25: #{self_train_loss.1} parent=15 // pred_check
          %p215 = pneg %p114
        $region26: #{self_train_loss.1} parent=15 // pred_check_branch
          %217 = sbr.rel (%p215) target = $region28
        $region27: #{self_train_loss.1} parent=15 // pred_region
          %p218 = scmp.lt.s32.totalorder %s22, 1
          %s219 = scalar_select %p218, %s22, 1
          %s220 = smul.addr %s219, 2
          %s221 = smul.addr %s220, 8
          %s222 = scalar_lea.vmem %s2, %s221
        $region28: #{self_train_loss.1} parent=15 // pred_fallthru
          _
      $region16: #{self_train_loss.1} parent=5 // pred_fallthru
        _
      %p223 = scmp.le.s32.totalorder 1, %s15
      %p224 = scmp.lt.s32.totalorder %s15, 3
      %p225 = pnand %p223, %p224
      %p226 = pneg %p225
      // Predicated region
      $region29: #{self_train_loss.1} parent=5 // pred_check
        _
      $region30: #{self_train_loss.1} parent=5 // pred_check_branch
        %228 = sbr.rel (%p225) target = $region32
      $region31: #{self_train_loss.1} parent=5 // pred_region
        %s229 = ssub.s32 %s15, 1
        %s230 = sand.u32 %s51, 1
        %s231 = scalar_lea.sflag [#allocation3], %s230
        %s232 = sand.u32 %s51, 1
        %s233 = smul.addr %s232, 32
        %s234 = scalar_lea.vmem [#allocation2], %s233
        // Predicated region
        $region33: #{self_train_loss.1} parent=31 // pred_check
          %p235 = pneg %p64
        $region34: #{self_train_loss.1} parent=31 // pred_check_branch
          %237 = sbr.rel (%p235) target = $region36
        $region35: #{self_train_loss.1} parent=31 // pred_region
          %238 = dma.done %s231, 512
        $region36: #{self_train_loss.1} parent=31 // pred_fallthru
          _
        %s239 = sand.u32 %s81, 1
        %s240 = scalar_lea.sflag [#allocation5], %s239
        %s241 = sand.u32 %s81, 1
        %s242 = smul.addr %s241, 32
        %s243 = scalar_lea.vmem [#allocation4], %s242
        // Predicated region
        $region37: #{self_train_loss.1} parent=31 // pred_check
          %p244 = pneg %p94
        $region38: #{self_train_loss.1} parent=31 // pred_check_branch
          %246 = sbr.rel (%p244) target = $region40
        $region39: #{self_train_loss.1} parent=31 // pred_region
          %247 = dma.done %s240, 512
        $region40: #{self_train_loss.1} parent=31 // pred_fallthru
          _
        %s248 = sand.u32 %s51, 1
        %s249 = scalar_lea.sflag [#allocation3], %s248
        %s250 = sand.u32 %s51, 1
        %s251 = smul.addr %s250, 32
        %s252 = scalar_lea.vmem [#allocation2], %s251
        %p253 = pneg %p64
        %p254 = pneg %p61
        %s255 = sand.u32 %s81, 1
        %s256 = scalar_lea.sflag [#allocation5], %s255
        %s257 = sand.u32 %s81, 1
        %s258 = smul.addr %s257, 32
        %s259 = scalar_lea.vmem [#allocation4], %s258
        %p260 = pneg %p94
        %p261 = pneg %p91
        %p262 = scmp.lt.s32.totalorder %s25, 1
        %s263 = scalar_select %p262, %s25, 1
        %s264 = smul.addr %s263, 2
        %s265 = smul.addr %s264, 8
        %s266 = scalar_lea.vmem %s2, %s265
        %p267 = pneg %p120
        %p268 = pneg %p117
        %p269 = pneg %p148
        %p270 = pneg %p145
        %p271 = scmp.lt.s32.totalorder %s25, 1
        %s272 = scalar_select %p271, %s25, 1
        %p273 = scmp.lt.s32.totalorder %s26, 0
        %s274 = scalar_select %p273, %s26, 0
        %s275 = smul.addr %s274, 2
        %s276 = smul.addr %s272, 2
        %s277 = sadd.s32 %s275, %s276
        %s278 = scalar_lea.vmem %s3, %s277
        %s279 = sadd.s32 %s26, %s27
        %s280 = smul.u32 2, %s279
        %s281 = sadd.s32 %s26, %s27
        %s282 = smul.u32 2, %s281
        %p283 = scmp.lt.s32.totalorder %s25, 1
        %s284 = scalar_select %p283, %s25, 1
        %s285 = smul.addr %s284, 2
        %s286 = smul.addr %s285, 8
        %s287 = scalar_lea.vmem %s2, %s286
        %p288 = scmp.lt.s32.totalorder %s25, 1
        %s289 = scalar_select %p288, %s25, 1
        %p290 = scmp.lt.s32.totalorder %s26, 0
        %s291 = scalar_select %p290, %s26, 0
        %s292 = smul.addr %s291, 2
        %s293 = smul.addr %s289, 2
        %s294 = sadd.s32 %s292, %s293
        %s295 = scalar_lea.vmem %s3, %s294
        %p296 = scmp.eq.s32.totalorder %s27, 0
        // Predicated region
        $region41: #{self_train_loss.1} parent=31 // pred_check
          %p297 = pneg %p296
        $region42: #{self_train_loss.1} parent=31 // pred_check_branch
          %299 = sbr.rel (%p297) target = $region44
        $region43: #{self_train_loss.1} parent=31 // pred_region
          %v300 = vlaneseq
          %vm301 = vcmp.ge.s32.totalorder %v300, 0
          %vm302 = vcmp.lt.s32.totalorder %v300, 200
          %vm303 = vmand %vm301, %vm302
          %304 = vst.msk [vmem:[%s295] sm:$0x3] %vm303, 0.0
        $region44: #{self_train_loss.1} parent=31 // pred_fallthru
          _
        %v305 = vld [vmem:[%s234] sm:$0xff]
        %v306 = vld [vmem:[%s234 + $0x8] sm:$0xff]
        %v307 = vld [vmem:[%s234 + $0x10] sm:$0xff]
        %v308 = vld [vmem:[%s234 + $0x18] sm:$0xff]
        %v309 = vld [vmem:[%s243] sm:$0xff]
        %v310 = vld [vmem:[%s243 + $0x8] sm:$0xff]
        %v311 = vld [vmem:[%s243 + $0x10] sm:$0xff]
        %v312 = vld [vmem:[%s243 + $0x18] sm:$0xff]
        %v313 = vmax.f32 %v305, %v307
        %v314 = vrot.slane %v313, 4
        %v315 = vmax.f32 %v313, %v314
        %v316 = vrot.slane %v315, 2
        %v317 = vmax.f32 %v315, %v316
        %v318 = vrot.slane %v317, 1
        %v319 = vmax.f32 %v317, %v318
        %vm320 = vcmask 588800
        %v321 = vsel %vm320, %v306, -inf
        %v322 = vsel %vm320, %v308, -inf
        %v323 = vmax.f32 %v321, %v322
        %v324 = vrot.slane %v323, 4
        %v325 = vmax.f32 %v323, %v324
        %v326 = vrot.slane %v325, 2
        %v327 = vmax.f32 %v325, %v326
        %v328 = vrot.slane %v327, 1
        %v329 = vmax.f32 %v327, %v328
        %v330 = vsub.f32 %v305, %v319
        %v331 = vsub.f32 %v306, %v329
        %v332 = vsub.f32 %v307, %v319
        %v333 = vsub.f32 %v308, %v329
        %v334 = vmul.f32 %v330, 1.442695
        %v335 = vpow.pop %v334
        %v336 = vmul.f32 %v331, 1.442695
        %v337 = vpow.pop %v336
        %v338 = vmul.f32 %v332, 1.442695
        %v339 = vpow.pop %v338
        %v340 = vmul.f32 %v333, 1.442695
        %v341 = vpow.pop %v340
        %v342 = vadd.f32 %v335, %v339
        %v343 = vrot.slane %v342, 4
        %v344 = vadd.f32 %v342, %v343
        %v345 = vrot.slane %v344, 2
        %v346 = vadd.f32 %v344, %v345
        %v347 = vrot.slane %v346, 1
        %v348 = vadd.f32 %v346, %v347
        %v349 = vsel %vm320, %v337, 0.0
        %v350 = vsel %vm320, %v341, 0.0
        %v351 = vadd.f32 %v349, %v350
        %v352 = vrot.slane %v351, 4
        %v353 = vadd.f32 %v351, %v352
        %v354 = vrot.slane %v353, 2
        %v355 = vadd.f32 %v353, %v354
        %v356 = vrot.slane %v355, 1
        %v357 = vadd.f32 %v355, %v356
        %v358 = vlog2.pop %v348
        %v359 = vmul.f32 %v358, 0.6931472
        %v360 = vlog2.pop %v357
        %v361 = vmul.f32 %v360, 0.6931472
        %v362 = vsub.f32 %v330, %v359
        %v363 = vsub.f32 %v331, %v361
        %v364 = vsub.f32 %v332, %v359
        %v365 = vsub.f32 %v333, %v361
        %v366 = vmax.f32 %v309, %v311
        %v367 = vrot.slane %v366, 4
        %v368 = vmax.f32 %v366, %v367
        %v369 = vrot.slane %v368, 2
        %v370 = vmax.f32 %v368, %v369
        %v371 = vrot.slane %v370, 1
        %v372 = vmax.f32 %v370, %v371
        %v373 = vsel %vm320, %v310, -inf
        %v374 = vsel %vm320, %v312, -inf
        %v375 = vmax.f32 %v373, %v374
        %v376 = vrot.slane %v375, 4
        %v377 = vmax.f32 %v375, %v376
        %v378 = vrot.slane %v377, 2
        %v379 = vmax.f32 %v377, %v378
        %v380 = vrot.slane %v379, 1
        %v381 = vmax.f32 %v379, %v380
        %v382 = vsub.f32 %v309, %v372
        %v383 = vsub.f32 %v310, %v381
        %v384 = vsub.f32 %v311, %v372
        %v385 = vsub.f32 %v312, %v381
        %v386 = vmul.f32 %v382, 1.442695
        %v387 = vpow.pop %v386
        %v388 = vmul.f32 %v383, 1.442695
        %v389 = vpow.pop %v388
        %v390 = vmul.f32 %v384, 1.442695
        %v391 = vpow.pop %v390
        %v392 = vmul.f32 %v385, 1.442695
        %v393 = vpow.pop %v392
        %v394 = vadd.f32 %v387, %v391
        %v395 = vrot.slane %v394, 4
        %v396 = vadd.f32 %v394, %v395
        %v397 = vrot.slane %v396, 2
        %v398 = vadd.f32 %v396, %v397
        %v399 = vrot.slane %v398, 1
        %v400 = vadd.f32 %v398, %v399
        %v401 = vsel %vm320, %v389, 0.0
        %v402 = vsel %vm320, %v393, 0.0
        %v403 = vadd.f32 %v401, %v402
        %v404 = vrot.slane %v403, 4
        %v405 = vadd.f32 %v403, %v404
        %v406 = vrot.slane %v405, 2
        %v407 = vadd.f32 %v405, %v406
        %v408 = vrot.slane %v407, 1
        %v409 = vadd.f32 %v407, %v408
        %v410 = vrcp.pop %v400
        %v411 = vrcp.pop %v409
        %v412 = vmul.f32 %v400, %v410
        %v413 = vmul.f32 %v409, %v411
        %v414 = vsub.f32 2.0, %v412
        %v415 = vsub.f32 2.0, %v413
        %v416 = vmul.f32 %v410, %v414
        %v417 = vmul.f32 %v411, %v415
        %v418 = vmul.f32 %v387, %v416
        %v419 = vmul.f32 %v389, %v417
        %v420 = vmul.f32 %v391, %v416
        %v421 = vmul.f32 %v393, %v417
        %v422 = vlog2.pop %v400
        %v423 = vmul.f32 %v422, 0.6931472
        %v424 = vlog2.pop %v409
        %v425 = vmul.f32 %v424, 0.6931472
        %v426 = vsub.f32 %v382, %v423
        %v427 = vsub.f32 %v383, %v425
        %v428 = vsub.f32 %v384, %v423
        %v429 = vsub.f32 %v385, %v425
        %v430 = vld [vmem:[%s287] sm:$0xff]
        %v431 = vld [vmem:[%s287 + $0x8] sm:$0xff]
        %vm432 = vcmp.gt.f32.partialorder %v430, 0.0
        %vm433 = vcmp.gt.f32.partialorder %v431, 0.0
        %v434 = vsel %vm432, %v430, 1.0
        %v435 = vsel %vm433, %v431, 1.0
        %v436 = vlog2.pop %v434
        %v437 = vmul.f32 %v436, 0.6931472
        %v438 = vlog2.pop %v435
        %v439 = vmul.f32 %v438, 0.6931472
        %441 = vset.pattern.permute.xlu0 0
        %442 = vperm.xlu0 %441, %v430
        %v443 = vpop.permute.xlu0 %442
        %446 = vset.pattern.permute.xlu0 0
        %447 = vperm.xlu0 %446, %v431
        %v448 = vpop.permute.xlu0 %447
        %451 = vset.pattern.permute.xlu0 0
        %452 = vperm.xlu0 %451, %v437
        %v453 = vpop.permute.xlu0 %452
        %456 = vset.pattern.permute.xlu0 0
        %457 = vperm.xlu0 %456, %v439
        %v458 = vpop.permute.xlu0 %457
        %v460 = vmul.f32 %v418, %v443
        %v461 = vmul.f32 %v419, %v443
        %v462 = vmul.f32 %v420, %v448
        %v463 = vmul.f32 %v421, %v448
        %vm464 = vcmp.gt.f32.partialorder %v443, 0.0
        %vm465 = vcmp.gt.f32.partialorder %v448, 0.0
        %v466 = vadd.f32 %v426, %v453
        %v467 = vadd.f32 %v427, %v453
        %v468 = vadd.f32 %v428, %v458
        %v469 = vadd.f32 %v429, %v458
        %v470 = vmul.f32 %v443, %v362
        %v471 = vmul.f32 %v443, %v363
        %v472 = vmul.f32 %v448, %v364
        %v473 = vmul.f32 %v448, %v365
        %v474 = vsub.f32 %v466, %v470
        %v475 = vsub.f32 %v467, %v471
        %v476 = vsub.f32 %v468, %v472
        %v477 = vsub.f32 %v469, %v473
        %v478 = vmul.f32 %v460, %v474
        %v479 = vmul.f32 %v461, %v475
        %v480 = vmul.f32 %v462, %v476
        %v481 = vmul.f32 %v463, %v477
        %v482 = vsel %vm464, %v478, 0.0
        %v483 = vsel %vm464, %v479, 0.0
        %v484 = vsel %vm465, %v480, 0.0
        %v485 = vsel %vm465, %v481, 0.0
        %v486 = vadd.f32 %v482, %v484
        %v487 = vrot.slane %v486, 4
        %v488 = vadd.f32 %v486, %v487
        %v489 = vrot.slane %v488, 2
        %v490 = vadd.f32 %v488, %v489
        %v491 = vrot.slane %v490, 1
        %v492 = vadd.f32 %v490, %v491
        %v493 = vsel %vm320, %v483, 0.0
        %v494 = vsel %vm320, %v485, 0.0
        %v495 = vadd.f32 %v493, %v494
        %v496 = vrot.slane %v495, 4
        %v497 = vadd.f32 %v495, %v496
        %v498 = vrot.slane %v497, 2
        %v499 = vadd.f32 %v497, %v498
        %v500 = vrot.slane %v499, 1
        %v501 = vadd.f32 %v499, %v500
        %v502 = vld [vmem:[%s295] sm:$0x3]
        %v505 = vcombine.low %v492, %v501
        %v507 = vunpack.c.l.s4 1966171168
        %v508 = vunpack.c.0.s8 %v507
        %v509 = vlaneseq
        %v510 = vshrl.u32 %v509, 7
        %v511 = vsub.s32 %v508, %v510
        %v512 = vrot.slane %v505, %v511
        %v514 = vunpack.c.l.s4 1966171168
        %v515 = vunpack.c.0.s8 %v514
        %v516 = vlaneseq
        %v517 = vshrl.u32 %v516, 7
        %v518 = vsub.s32 %v515, %v517
        %v519 = vrot.slane %v512, %v518
        %v521 = vadd.f32 %v502, %v519
        %v522 = vlaneseq
        %vm523 = vcmp.ge.s32.totalorder %v522, 0
        %vm524 = vcmp.lt.s32.totalorder %v522, 200
        %vm525 = vmand %vm523, %vm524
        %526 = vst.msk [vmem:[%s295] sm:$0x3] %vm525, %v521
        %p527 = scmp.lt.s32.totalorder %s25, 1
        %s528 = scalar_select %p527, %s25, 1
        %p529 = scmp.lt.s32.totalorder %s26, 0
        %s530 = scalar_select %p529, %s26, 0
        %s531 = smul.addr %s530, 2
        %s532 = smul.addr %s528, 2
        %s533 = sadd.s32 %s531, %s532
        %s534 = scalar_lea.vmem %s3, %s533
        // Predicated region
        $region45: #{self_train_loss.1} parent=31 // pred_check
          %p535 = pneg %p145
        $region46: #{self_train_loss.1} parent=31 // pred_check_branch
          %537 = sbr.rel (%p535) target = $region48
        $region47: #{self_train_loss.1} parent=31 // pred_region
          _
        $region48: #{self_train_loss.1} parent=31 // pred_fallthru
          _
      $region32: #{self_train_loss.1} parent=5 // pred_fallthru
        _
      %p538 = scmp.le.s32.totalorder 2, %s15
      // Predicated region
      $region49: #{self_train_loss.1} parent=5 // pred_check
        %p539 = pneg %p538
      $region50: #{self_train_loss.1} parent=5 // pred_check_branch
        %541 = sbr.rel (%p539) target = $region52
      $region51: #{self_train_loss.1} parent=5 // pred_region
        %s542 = ssub.s32 %s15, 2
        // Predicated region
        $region53: #{self_train_loss.1} parent=51 // pred_check
          %p543 = pneg %p151
        $region54: #{self_train_loss.1} parent=51 // pred_check_branch
          %545 = sbr.rel (%p543) target = $region56
        $region55: #{self_train_loss.1} parent=51 // pred_region
          %p546 = scmp.lt.s32.totalorder %s28, 1
          %s547 = scalar_select %p546, %s28, 1
          %p548 = scmp.lt.s32.totalorder %s29, 0
          %s549 = scalar_select %p548, %s29, 0
          %s550 = smul.addr %s549, 2
          %s551 = smul.addr %s547, 2
          %s552 = sadd.s32 %s550, %s551
          %s553 = scalar_lea.vmem %s3, %s552
        $region56: #{self_train_loss.1} parent=51 // pred_fallthru
          _
      $region52: #{self_train_loss.1} parent=5 // pred_fallthru
        _
    $region6: #{self_train_loss.1} parent=1 // loop_footer
      %s19 = sadd.s32 1, %s15
    $region7: #{self_train_loss.1} parent=1 // loop_footer_branch
      %14 = sbr.rel target = $region3
    $region8: #{self_train_loss.1} parent=1 // loop_exit
      _
    %554 = vsyncpa [#allocation3], 1
    %s555 = scalar_lea.sflag [#allocation3], 1
    %556 = vsyncpa %s555, 1
    %557 = vsyncpa [#allocation5], 1
    %s558 = scalar_lea.sflag [#allocation5], 1
    %559 = vsyncpa %s558, 1

</llo_original>
